<compile_context>
chip_gen: v6e
topology: v6e:2x2x1
jax: 0.10.0
libtpu: 0.0.40
codegen_flags: <defaults>
</compile_context>

<pallas_src>
import functools

import jax
import jax.numpy as jnp
from jax.experimental import pallas as pl
from jax.experimental.pallas import tpu as pltpu


def _round_up(n, m):
    return ((n + m - 1) // m) * m


def _mlp_kernel(x_ref, w1_ref, b1_ref, w2_ref, b2_ref, w3_ref, b3_ref, o_ref):
    # ---- hot path: two bf16 MXU matmuls + f32 bias/ReLU + VPU/XLU final projection ----
    x = x_ref[...]
    if x.dtype != jnp.bfloat16:            # skip the cast when the producer already gave bf16
        x = x.astype(jnp.bfloat16)
    h1 = jnp.dot(x, w1_ref[...], preferred_element_type=jnp.float32) + b1_ref[...]
    h1 = jnp.maximum(h1, 0.0)              # ReLU (f32, VPU)
    # Dropout(0.3): identity at inference time.
    h2 = jnp.dot(h1.astype(jnp.bfloat16), w2_ref[...],
                 preferred_element_type=jnp.float32) + b2_ref[...]
    h2 = jnp.maximum(h2, 0.0)              # ReLU (f32, VPU)
    # Final Linear(128, 1): VPU multiply + lane (XLU) reduction, then one small XLU
    # transpose so the store is lane-dense (1, bm) instead of (bm, 1).
    out_col = jnp.sum(h2 * w3_ref[...], axis=-1, keepdims=True) + b3_ref[...]   # (bm, 1)
    o_ref[...] = jnp.transpose(out_col).astype(o_ref.dtype)                     # (1, bm)


@functools.partial(jax.jit, static_argnames=("block_m",))
def cv_bert_regressor(x, params, *, block_m=1024):
    """x: (B, input_dim) float32 (or bfloat16) -> (B, 1) float32."""
    w1, b1, w2, b2, w3, b3 = params
    B, D = x.shape
    H1 = w1.shape[1]   # 256
    H2 = w2.shape[1]   # 128
    O = w3.shape[1]    # 1

    # bf16 operands for the MXU (accumulation stays f32 inside the kernel).
    w1_bf = w1.astype(jnp.bfloat16)
    w2_bf = w2.astype(jnp.bfloat16)
    # Final projection as a lane-aligned (1, H2) row for the VPU/XLU path (O == 1).
    w3_row = jnp.transpose(w3).astype(jnp.float32)               # (1, H2)

    # ---- batch tile selection -------------------------------------------------
    x_bytes = jnp.dtype(x.dtype).itemsize
    # Per-row VMEM bytes: double-buffered x tile, in-kernel bf16 x copy (only if cast
    # needed), f32 h1 + bf16 h1 copy, f32 h2, double-buffered lane-dense output row.
    per_row = (2 * D * x_bytes
               + (D * 2 if x_bytes != 2 else 0)
               + H1 * (4 + 2)
               + H2 * 4
               + 2 * 4)
    # Fixed bytes: resident (double-buffered) bf16 W1/W2 + small f32 biases / W3 row.
    fixed = 2 * (D * H1 * 2) + 2 * (H1 * H2 * 2) + 4 * 2 * (H1 + 2 * H2 + O)
    vmem_limit = 48 * 1024 * 1024          # explicit scoped limit (v7x physical = 64 MiB)
    budget = vmem_limit // 2               # size tiles against ~50% of the limit

    bm = max(128, min(block_m, _round_up(B, 128)))
    # v7x: keep >= 2 programs on the parallel axis so both TensorCores get work.
    if B >= 256:
        bm = min(bm, _round_up(pl.cdiv(B, 2), 128))
    while bm > 128 and fixed + bm * per_row > budget:
        bm -= 128
    if bm > B:
        bm = B                              # single block == full array (no masking needed)

    grid = (pl.cdiv(B, bm),)                # non-divisible last block handled by Pallas masking
    full = lambda i: (0, 0)

    out_row = pl.pallas_call(
        _mlp_kernel,
        out_shape=jax.ShapeDtypeStruct((1, B), jnp.float32),
        grid_spec=pltpu.PrefetchScalarGridSpec(
            num_scalar_prefetch=0,
            grid=grid,
            in_specs=[
                pl.BlockSpec((bm, D), lambda i: (i, 0)),   # x tile over batch
                pl.BlockSpec((D, H1), full),               # W1 (bf16, resident)
                pl.BlockSpec((1, H1), full),               # b1 (f32)
                pl.BlockSpec((H1, H2), full),              # W2 (bf16, resident)
                pl.BlockSpec((1, H2), full),               # b2 (f32)
                pl.BlockSpec((1, H2), full),               # W3 row (f32)
                pl.BlockSpec((1, O), full),                # b3 (f32)
            ],
            out_specs=pl.BlockSpec((1, bm), lambda i: (0, i)),   # lane-dense output row
        ),
        compiler_params=pltpu.CompilerParams(
            dimension_semantics=("parallel",),
            vmem_limit_bytes=vmem_limit,
        ),
    )(x, w1_bf, b1, w2_bf, b2, w3_row, b3)

    return out_row.reshape(B, 1)


def init_params(key, input_dim):
    """Deterministic init mimicking PyTorch nn.Linear default (U[-1/sqrt(fan_in), +1/sqrt(fan_in)])."""
    dims = [(input_dim, 256), (256, 128), (128, 1)]
    params = []
    keys = jax.random.split(key, 2 * len(dims))
    for li, (fan_in, fan_out) in enumerate(dims):
        bound = 1.0 / jnp.sqrt(fan_in)
        w = jax.random.uniform(keys[2 * li], (fan_in, fan_out),
                               minval=-bound, maxval=bound, dtype=jnp.float32)
        b = jax.random.uniform(keys[2 * li + 1], (1, fan_out),
                               minval=-bound, maxval=bound, dtype=jnp.float32)
        params.extend([w, b])
    return tuple(params)


def reference_f32(x, params):
    """Pure f32 forward (matches the PyTorch module in eval mode)."""
    w1, b1, w2, b2, w3, b3 = params
    h1 = jnp.maximum(x @ w1 + b1, 0.0)
    h2 = jnp.maximum(h1 @ w2 + b2, 0.0)
    return h2 @ w3 + b3


def reference_bf16_mxu(x, params):
    """Mirror of the kernel numerics: bf16 MXU operands, f32 accumulation, f32 VPU math."""
    w1, b1, w2, b2, w3, b3 = params
    h1 = jnp.dot(x.astype(jnp.bfloat16), w1.astype(jnp.bfloat16),
                 preferred_element_type=jnp.float32) + b1
    h1 = jnp.maximum(h1, 0.0)
    h2 = jnp.dot(h1.astype(jnp.bfloat16), w2.astype(jnp.bfloat16),
                 preferred_element_type=jnp.float32) + b2
    h2 = jnp.maximum(h2, 0.0)
    # Same elementwise-multiply + lane-reduce formulation as the kernel's final projection.
    return jnp.sum(h2 * jnp.transpose(w3), axis=-1, keepdims=True) + b3


if __name__ == "__main__":
    key = jax.random.PRNGKey(0)
    k_x, k_p = jax.random.split(key)

    batch, input_dim = 8, 32
    x = jax.random.normal(k_x, (batch, input_dim), dtype=jnp.float32)
    params = init_params(k_p, input_dim)

    out = jax.block_until_ready(cv_bert_regressor(x, params))
    assert out.shape == (batch, 1), out.shape
    # Tight check against a reference with identical (bf16-operand, f32-accumulate) numerics.
    ref_q = reference_bf16_mxu(x, params)
    assert jnp.allclose(out, ref_q, atol=1e-3, rtol=1e-3), "mismatch vs bf16-operand reference"
    # Loose sanity check against the pure-f32 module forward.
    ref = reference_f32(x, params)
    assert jnp.allclose(out, ref, atol=5e-2, rtol=5e-2), "mismatch vs f32 reference"

    # Multi-tile grid with a non-divisible last block (exercises the masked OOB path
    # that replaced the wrapper-side jnp.pad).
    batch2 = 300
    x2 = jax.random.normal(k_x, (batch2, input_dim), dtype=jnp.float32)
    out2 = jax.block_until_ready(cv_bert_regressor(x2, params, block_m=128))
    assert out2.shape == (batch2, 1), out2.shape
    ref2 = reference_bf16_mxu(x2, params)
    assert jnp.allclose(out2, ref2, atol=1e-3, rtol=1e-3), "mismatch on non-divisible batch"

    print("KERNEL_OK")
</pallas_src>

<mosaic_0001>
module attributes {stable_mosaic.version = 11 : i64} {
  func.func @_mlp_kernel(%arg0: i32, %arg1: memref<8x32xf32, #tpu.memory_space<vmem>>, %arg2: memref<32x256xbf16, #tpu.memory_space<vmem>>, %arg3: memref<1x256xf32, #tpu.memory_space<vmem>>, %arg4: memref<256x128xbf16, #tpu.memory_space<vmem>>, %arg5: memref<1x128xf32, #tpu.memory_space<vmem>>, %arg6: memref<1x128xf32, #tpu.memory_space<vmem>>, %arg7: memref<1x1xf32, #tpu.memory_space<vmem>>, %arg8: memref<1x8xf32, #tpu.memory_space<vmem>>) attributes {dimension_semantics = [#tpu.dimension_semantics<parallel>], iteration_bounds = array<i64: 1>, scalar_prefetch = 0 : i64, scratch_operands = 0 : i64, tpu.core_type = #tpu.core_type<tc>, window_params = [{transform_indices = @transform_0, window_bounds = array<i64: 8, 32>}, {pipeline_mode = #tpu.pipeline_mode<synchronous>, transform_indices = @transform_1, window_bounds = array<i64: 32, 256>}, {pipeline_mode = #tpu.pipeline_mode<synchronous>, transform_indices = @transform_2, window_bounds = array<i64: 1, 256>}, {pipeline_mode = #tpu.pipeline_mode<synchronous>, transform_indices = @transform_3, window_bounds = array<i64: 256, 128>}, {pipeline_mode = #tpu.pipeline_mode<synchronous>, transform_indices = @transform_4, window_bounds = array<i64: 1, 128>}, {pipeline_mode = #tpu.pipeline_mode<synchronous>, transform_indices = @transform_5, window_bounds = array<i64: 1, 128>}, {pipeline_mode = #tpu.pipeline_mode<synchronous>, transform_indices = @transform_6, window_bounds = array<i64: 1, 1>}, {transform_indices = @transform_7, window_bounds = array<i64: 1, 8>}]} {
    %c0 = arith.constant 0 : index
    %c0_0 = arith.constant 0 : index
    %0 = vector.load %arg1[%c0, %c0_0] : memref<8x32xf32, #tpu.memory_space<vmem>>, vector<8x32xf32>
    %1 = arith.truncf %0 : vector<8x32xf32> to vector<8x32xbf16>
    %c0_1 = arith.constant 0 : index
    %c0_2 = arith.constant 0 : index
    %2 = vector.load %arg2[%c0_1, %c0_2] : memref<32x256xbf16, #tpu.memory_space<vmem>>, vector<32x256xbf16>
    %cst = arith.constant dense<0.000000e+00> : vector<8x256xf32>
    %3 = tpu.matmul %1, %2, %cst {dimension_numbers = #tpu.dot_dimension_numbers<[1], [0], [0], [1], [0, 0, 1, 1], [], []>} : vector<8x32xbf16>, vector<32x256xbf16>, vector<8x256xf32> -> vector<8x256xf32>
    %c0_3 = arith.constant 0 : index
    %c0_4 = arith.constant 0 : index
    %4 = vector.load %arg3[%c0_3, %c0_4] : memref<1x256xf32, #tpu.memory_space<vmem>>, vector<1x256xf32>
    %5 = vector.broadcast %4 : vector<1x256xf32> to vector<8x256xf32>
    %6 = arith.addf %3, %5 : vector<8x256xf32>
    %cst_5 = arith.constant 0.000000e+00 : f32
    %7 = vector.broadcast %cst_5 : f32 to vector<8x256xf32>
    %8 = arith.maximumf %6, %7 : vector<8x256xf32>
    %9 = arith.truncf %8 : vector<8x256xf32> to vector<8x256xbf16>
    %c0_6 = arith.constant 0 : index
    %c0_7 = arith.constant 0 : index
    %10 = vector.load %arg4[%c0_6, %c0_7] : memref<256x128xbf16, #tpu.memory_space<vmem>>, vector<256x128xbf16>
    %cst_8 = arith.constant dense<0.000000e+00> : vector<8x128xf32>
    %11 = tpu.matmul %9, %10, %cst_8 {dimension_numbers = #tpu.dot_dimension_numbers<[1], [0], [0], [1], [0, 0, 1, 1], [], []>} : vector<8x256xbf16>, vector<256x128xbf16>, vector<8x128xf32> -> vector<8x128xf32>
    %c0_9 = arith.constant 0 : index
    %c0_10 = arith.constant 0 : index
    %12 = vector.load %arg5[%c0_9, %c0_10] : memref<1x128xf32, #tpu.memory_space<vmem>>, vector<1x128xf32>
    %13 = vector.broadcast %12 : vector<1x128xf32> to vector<8x128xf32>
    %14 = arith.addf %11, %13 : vector<8x128xf32>
    %cst_11 = arith.constant 0.000000e+00 : f32
    %15 = vector.broadcast %cst_11 : f32 to vector<8x128xf32>
    %16 = arith.maximumf %14, %15 : vector<8x128xf32>
    %c0_12 = arith.constant 0 : index
    %c0_13 = arith.constant 0 : index
    %17 = vector.load %arg6[%c0_12, %c0_13] : memref<1x128xf32, #tpu.memory_space<vmem>>, vector<1x128xf32>
    %18 = vector.broadcast %17 : vector<1x128xf32> to vector<8x128xf32>
    %19 = arith.mulf %16, %18 : vector<8x128xf32>
    %cst_14 = arith.constant dense<0.000000e+00> : vector<8xf32>
    %20 = vector.multi_reduction <add>, %19, %cst_14 [1] : vector<8x128xf32> to vector<8xf32>
    %21 = vector.shape_cast %20 : vector<8xf32> to vector<8x1xf32>
    %c0_15 = arith.constant 0 : index
    %c0_16 = arith.constant 0 : index
    %22 = vector.load %arg7[%c0_15, %c0_16] : memref<1x1xf32, #tpu.memory_space<vmem>>, vector<1x1xf32>
    %23 = vector.broadcast %22 : vector<1x1xf32> to vector<8x1xf32>
    %24 = arith.addf %21, %23 : vector<8x1xf32>
    %25 = tpu.transpose %24, [1, 0] : vector<8x1xf32> -> vector<1x8xf32>
    %c0_17 = arith.constant 0 : index
    %c0_18 = arith.constant 0 : index
    %26 = vector.load %arg8[%c0_17, %c0_18] : memref<1x8xf32, #tpu.memory_space<vmem>>, vector<1x8xf32>
    tpu.vector_store %arg8[%c0_17, %c0_18], %25 {strides = array<i32>} : memref<1x8xf32, #tpu.memory_space<vmem>>, vector<1x8xf32>,
    return
  }
  func.func @transform_0(%arg0: i32) -> (i32, i32) {
    %c0_i32 = arith.constant 0 : i32
    %c0_i32_0 = arith.constant 0 : i32
    return %arg0, %c0_i32 : i32, i32
  }
  func.func @transform_1(%arg0: i32) -> (i32, i32) {
    %c0_i32 = arith.constant 0 : i32
    %c0_i32_0 = arith.constant 0 : i32
    %c0_i32_1 = arith.constant 0 : i32
    return %c0_i32, %c0_i32_0 : i32, i32
  }
  func.func @transform_2(%arg0: i32) -> (i32, i32) {
    %c0_i32 = arith.constant 0 : i32
    %c0_i32_0 = arith.constant 0 : i32
    %c0_i32_1 = arith.constant 0 : i32
    return %c0_i32, %c0_i32_0 : i32, i32
  }
  func.func @transform_3(%arg0: i32) -> (i32, i32) {
    %c0_i32 = arith.constant 0 : i32
    %c0_i32_0 = arith.constant 0 : i32
    %c0_i32_1 = arith.constant 0 : i32
    return %c0_i32, %c0_i32_0 : i32, i32
  }
  func.func @transform_4(%arg0: i32) -> (i32, i32) {
    %c0_i32 = arith.constant 0 : i32
    %c0_i32_0 = arith.constant 0 : i32
    %c0_i32_1 = arith.constant 0 : i32
    return %c0_i32, %c0_i32_0 : i32, i32
  }
  func.func @transform_5(%arg0: i32) -> (i32, i32) {
    %c0_i32 = arith.constant 0 : i32
    %c0_i32_0 = arith.constant 0 : i32
    %c0_i32_1 = arith.constant 0 : i32
    return %c0_i32, %c0_i32_0 : i32, i32
  }
  func.func @transform_6(%arg0: i32) -> (i32, i32) {
    %c0_i32 = arith.constant 0 : i32
    %c0_i32_0 = arith.constant 0 : i32
    %c0_i32_1 = arith.constant 0 : i32
    return %c0_i32, %c0_i32_0 : i32, i32
  }
  func.func @transform_7(%arg0: i32) -> (i32, i32) {
    %c0_i32 = arith.constant 0 : i32
    %c0_i32_0 = arith.constant 0 : i32
    return %c0_i32, %arg0 : i32, i32
  }
}

</mosaic_0001>

<llo_original>
// kernel: cv_bert_regressor.1
$region0: #{cv_bert_regressor.1}
  #allocation0 [shape = 'u32[]', space=smem, size = 0x4, offset = 0x4, fixed_abs, tag = 'smem constant byte address 0x4 - core index']
  #allocation1 [shape = 'u32[144,128]{1,0:T(1,128)}', space=vmem, size = 0x12000, scoped, tag = 'internal scratch']
  #allocation2 [shape = 'f32[1,1]{1,0:T(1,128)S(1)}', space=vmem, size = 0x200, scoped, tag = 'scoped memory for cv_bert_regressor.1']
  %s0 = inlined_call_operand.vmem [shape: f32[8,32], index: 0, kind: input, shape index: {}]
  %s1 = inlined_call_operand.vmem [shape: bf16[32,256], index: 1, kind: input, shape index: {}]
  %s2 = inlined_call_operand.vmem [shape: f32[1,256], index: 2, kind: input, shape index: {}]
  %s3 = inlined_call_operand.vmem [shape: bf16[256,128], index: 3, kind: input, shape index: {}]
  %s4 = inlined_call_operand.vmem [shape: f32[1,128], index: 4, kind: input, shape index: {}]
  %s5 = inlined_call_operand.vmem [shape: f32[1,128], index: 5, kind: input, shape index: {}]
  %s6 = inlined_call_operand.<no memory space> [shape: f32[1,1], index: 6, kind: input, shape index: {}]
  %s7 = inlined_call_operand.hbm [shape: f32[1,8], index: 7, kind: output, shape index: {}]
  %s8 = sld [smem:[#allocation0]]
  $region38: #{cv_bert_regressor.1} parent=0
    _
  %s10 = ssub.s32 1, %s8
  %s11 = scalar_select 0, %s10, %s8
  %v12 = vstv %s6
  %13 = vst [vmem:[#allocation2] sm:$0x1] %v12
  $region1: #{cv_bert_regressor.1} parent=0
    #allocation3 [shape = 'u8[512]{0}', space=vmem, size = 0x400, scoped, tag = 'output window, operand 0, single buffered']
    #allocation4 [shape = 's32[1]{0}', space=sflag, size = 0x4, scoped, tag = 'scoped memory for cv_bert_regressor.1']
    %14 = vsyncpa [#allocation4], 0
    // Predicated region
    $region2: #{cv_bert_regressor.1} parent=1 // pred_check
      _
    $region3: #{cv_bert_regressor.1} parent=1 // pred_check_branch
      %16 = sbr.rel (0) target = $region5
    $region4: #{cv_bert_regressor.1} parent=1 // pred_region
      _
    $region5: #{cv_bert_regressor.1} parent=1 // pred_fallthru
      _
    // Predicated region
    $region6: #{cv_bert_regressor.1} parent=1 // pred_check
      _
    $region7: #{cv_bert_regressor.1} parent=1 // pred_check_branch
      %18 = sbr.rel (0) target = $region9
    $region8: #{cv_bert_regressor.1} parent=1 // pred_region
      _
    $region9: #{cv_bert_regressor.1} parent=1 // pred_fallthru
      _
    // Predicated region
    $region10: #{cv_bert_regressor.1} parent=1 // pred_check
      _
    $region11: #{cv_bert_regressor.1} parent=1 // pred_check_branch
      %20 = sbr.rel (0) target = $region13
    $region12: #{cv_bert_regressor.1} parent=1 // pred_region
      _
    $region13: #{cv_bert_regressor.1} parent=1 // pred_fallthru
      _
    // Predicated region
    $region14: #{cv_bert_regressor.1} parent=1 // pred_check
      _
    $region15: #{cv_bert_regressor.1} parent=1 // pred_check_branch
      %22 = sbr.rel (0) target = $region17
    $region16: #{cv_bert_regressor.1} parent=1 // pred_region
      _
    $region17: #{cv_bert_regressor.1} parent=1 // pred_fallthru
      _
    // Predicated region
    $region18: #{cv_bert_regressor.1} parent=1 // pred_check
      _
    $region19: #{cv_bert_regressor.1} parent=1 // pred_check_branch
      %24 = sbr.rel (0) target = $region21
    $region20: #{cv_bert_regressor.1} parent=1 // pred_region
      _
    $region21: #{cv_bert_regressor.1} parent=1 // pred_fallthru
      _
    // Predicated region
    $region22: #{cv_bert_regressor.1} parent=1 // pred_check
      _
    $region23: #{cv_bert_regressor.1} parent=1 // pred_check_branch
      %26 = sbr.rel (0) target = $region25
    $region24: #{cv_bert_regressor.1} parent=1 // pred_region
      _
    $region25: #{cv_bert_regressor.1} parent=1 // pred_fallthru
      _
    // Predicated region
    $region26: #{cv_bert_regressor.1} parent=1 // pred_check
      _
    $region27: #{cv_bert_regressor.1} parent=1 // pred_check_branch
      %28 = sbr.rel (0) target = $region29
    $region28: #{cv_bert_regressor.1} parent=1 // pred_region
      _
    $region29: #{cv_bert_regressor.1} parent=1 // pred_fallthru
      _
    %v30 = vld [vmem:[%s0] sm:$0xff]
    %v31 = vpack.c.bf16 %v30, %v30
    %v32 = vld [vmem:[%s1] sm:$0xff]
    %v33 = vld [vmem:[%s1 + $0x8] sm:$0xff]
    %v34 = vld [vmem:[%s1 + $0x10] sm:$0xff]
    %v35 = vld [vmem:[%s1 + $0x18] sm:$0xff]
    %v36 = vld [vmem:[%s2] sm:$0x3]
    %v38 = vlaneseq
    %v39 = vshrl.u32 %v38, 7
    %v40 = vsub.s32 0, %v39
    %v41 = vrot.slane %v36, %v40
    %v42 = vlaneseq
    %v43 = vshrl.u32 %v42, 7
    %v44 = vsub.s32 1, %v43
    %v45 = vrot.slane %v36, %v44
    %v52 = vunpack.c.l.b16 %v32
    %v53 = vunpack.c.h.b16 %v32
    %v54 = vunpack.c.l.b16 %v33
    %v55 = vunpack.c.h.b16 %v33
    %v56 = vunpack.c.l.b16 %v34
    %v57 = vunpack.c.h.b16 %v34
    %v58 = vunpack.c.l.b16 %v35
    %v59 = vunpack.c.h.b16 %v35
    %v60 = vpack.c.b16 %v54, %v52
    %v61 = vpack.c.b16 %v55, %v53
    %v62 = vpack.c.b16 %v58, %v56
    %v63 = vpack.c.b16 %v59, %v57
    %vm68 = vcmask 261120
    %v70 = vsel %vm68, %v31, 0
    %72 = vmatprep.subr.bf16.mxu0 0
    %73 = vmatpush1.bf16.msra.mxu0 0
    %74 = vmatprep.subr.bf16.mxu0 0
    %75 = vmatpush1.bf16.msra.mxu0 0
    %76 = vmatprep.subr.bf16.mxu0 0
    %77 = vmatpush1.bf16.msra.mxu0 0
    %78 = vmatprep.subr.bf16.mxu0 0
    %79 = vmatpush1.bf16.msra.mxu0 0
    %80 = vmatprep.subr.bf16.mxu0 0
    %81 = vmatpush1.bf16.msra.mxu0 0
    %82 = vmatprep.subr.bf16.mxu0 0
    %83 = vmatpush1.bf16.msra.mxu0 0
    %84 = vmatprep.subr.bf16.mxu0 %v63
    %85 = vmatpush1.bf16.msra.mxu0 %v62
    %86 = vmatprep.subr.bf16.mxu0 %v61
    %87 = vmatpush1.bf16.msra.mxu0 %v60
    %88 = vmatprep.subr.bf16.mxu0 0
    %89 = vmatpush2.bf16.msra.mxu0 0
    %90 = vmatprep.subr.bf16.mxu0 0
    %91 = vmatpush2.bf16.msra.mxu0 0
    %92 = vmatprep.subr.bf16.mxu0 0
    %93 = vmatpush2.bf16.msra.mxu0 0
    %94 = vmatprep.subr.bf16.mxu0 0
    %95 = vmatpush2.bf16.msra.mxu0 0
    %96 = vmatprep.subr.bf16.mxu0 0
    %97 = vmatpush2.bf16.msra.mxu0 0
    %98 = vmatprep.subr.bf16.mxu0 0
    %99 = vmatpush2.bf16.msra.mxu0 0
    %100 = vmatprep.subr.bf16.mxu0 0
    %101 = vmatpush2.bf16.msra.mxu0 0
    %102 = vmatprep.subr.bf16.mxu0 0
    %103 = vmatpush2.bf16.msra.mxu0 0
    %104 = vmatprep.mubr.bf16.mxu0 0
    %105 = vmatmul.mubr.bf16.gmra.mxu0 %v70
    %v106 = vpop.f32.mrf.mxu0
    %v107 = vadd.f32 %v41, %v106
    %v108 = vpop.f32.mrf.mxu0
    %v109 = vadd.f32 %v45, %v108
    %v110 = vpop.f32.mrf.mxu0
    %v111 = vpop.f32.mrf.mxu0
    %112 = vdwg.mxu0
    %v113 = vmax.f32 %v107, 0.0
    %v114 = vmax.f32 %v109, 0.0
    %v115 = vpack.c.bf16 %v113, %v113
    %v116 = vpack.c.bf16 %v114, %v114
    %v117 = vld [vmem:[%s3] sm:$0xf]
    %v118 = vld [vmem:[%s3 + $0x4] sm:$0xf]
    %v119 = vld [vmem:[%s3 + $0x8] sm:$0xf]
    %v120 = vld [vmem:[%s3 + $0xc] sm:$0xf]
    %v121 = vld [vmem:[%s3 + $0x10] sm:$0xf]
    %v122 = vld [vmem:[%s3 + $0x14] sm:$0xf]
    %v123 = vld [vmem:[%s3 + $0x18] sm:$0xf]
    %v124 = vld [vmem:[%s3 + $0x1c] sm:$0xf]
    %v125 = vld [vmem:[%s3 + $0x20] sm:$0xf]
    %v126 = vld [vmem:[%s3 + $0x24] sm:$0xf]
    %v127 = vld [vmem:[%s3 + $0x28] sm:$0xf]
    %v128 = vld [vmem:[%s3 + $0x2c] sm:$0xf]
    %v129 = vld [vmem:[%s3 + $0x30] sm:$0xf]
    %v130 = vld [vmem:[%s3 + $0x34] sm:$0xf]
    %v131 = vld [vmem:[%s3 + $0x38] sm:$0xf]
    %v132 = vld [vmem:[%s3 + $0x3c] sm:$0xf]
    %v133 = vld [vmem:[%s3 + $0x40] sm:$0xf]
    %v134 = vld [vmem:[%s3 + $0x44] sm:$0xf]
    %v135 = vld [vmem:[%s3 + $0x48] sm:$0xf]
    %v136 = vld [vmem:[%s3 + $0x4c] sm:$0xf]
    %v137 = vld [vmem:[%s3 + $0x50] sm:$0xf]
    %v138 = vld [vmem:[%s3 + $0x54] sm:$0xf]
    %v139 = vld [vmem:[%s3 + $0x58] sm:$0xf]
    %v140 = vld [vmem:[%s3 + $0x5c] sm:$0xf]
    %v141 = vld [vmem:[%s3 + $0x60] sm:$0xf]
    %v142 = vld [vmem:[%s3 + $0x64] sm:$0xf]
    %v143 = vld [vmem:[%s3 + $0x68] sm:$0xf]
    %v144 = vld [vmem:[%s3 + $0x6c] sm:$0xf]
    %v145 = vld [vmem:[%s3 + $0x70] sm:$0xf]
    %v146 = vld [vmem:[%s3 + $0x74] sm:$0xf]
    %v147 = vld [vmem:[%s3 + $0x78] sm:$0xf]
    %v148 = vld [vmem:[%s3 + $0x7c] sm:$0xf]
    %v149 = vld [vmem:[%s4] sm:$0x1]
    %v151 = vlaneseq
    %v152 = vshrl.u32 %v151, 7
    %v153 = vsub.s32 0, %v152
    %v154 = vrot.slane %v149, %v153
    %v188 = vunpack.c.l.b16 %v117
    %v189 = vunpack.c.l.b16 %v118
    %v190 = vunpack.c.l.b16 %v119
    %v191 = vunpack.c.l.b16 %v120
    %v192 = vunpack.c.l.b16 %v121
    %v193 = vunpack.c.l.b16 %v122
    %v194 = vunpack.c.l.b16 %v123
    %v195 = vunpack.c.l.b16 %v124
    %v196 = vunpack.c.l.b16 %v125
    %v197 = vunpack.c.l.b16 %v126
    %v198 = vunpack.c.l.b16 %v127
    %v199 = vunpack.c.l.b16 %v128
    %v200 = vunpack.c.l.b16 %v129
    %v201 = vunpack.c.l.b16 %v130
    %v202 = vunpack.c.l.b16 %v131
    %v203 = vunpack.c.l.b16 %v132
    %v204 = vunpack.c.l.b16 %v133
    %v205 = vunpack.c.l.b16 %v134
    %v206 = vunpack.c.l.b16 %v135
    %v207 = vunpack.c.l.b16 %v136
    %v208 = vunpack.c.l.b16 %v137
    %v209 = vunpack.c.l.b16 %v138
    %v210 = vunpack.c.l.b16 %v139
    %v211 = vunpack.c.l.b16 %v140
    %v212 = vunpack.c.l.b16 %v141
    %v213 = vunpack.c.l.b16 %v142
    %v214 = vunpack.c.l.b16 %v143
    %v215 = vunpack.c.l.b16 %v144
    %v216 = vunpack.c.l.b16 %v145
    %v217 = vunpack.c.l.b16 %v146
    %v218 = vunpack.c.l.b16 %v147
    %v219 = vunpack.c.l.b16 %v148
    %v220 = vpack.c.b16 %v189, %v188
    %v221 = vpack.c.b16 %v191, %v190
    %v222 = vpack.c.b16 %v193, %v192
    %v223 = vpack.c.b16 %v195, %v194
    %v224 = vpack.c.b16 %v197, %v196
    %v225 = vpack.c.b16 %v199, %v198
    %v226 = vpack.c.b16 %v201, %v200
    %v227 = vpack.c.b16 %v203, %v202
    %v228 = vpack.c.b16 %v205, %v204
    %v229 = vpack.c.b16 %v207, %v206
    %v230 = vpack.c.b16 %v209, %v208
    %v231 = vpack.c.b16 %v211, %v210
    %v232 = vpack.c.b16 %v213, %v212
    %v233 = vpack.c.b16 %v215, %v214
    %v234 = vpack.c.b16 %v217, %v216
    %v235 = vpack.c.b16 %v219, %v218
    %252 = vmatprep.subr.bf16.mxu0 0
    %253 = vmatpush1.bf16.msra.mxu0 %v227
    %254 = vmatprep.subr.bf16.mxu0 0
    %255 = vmatpush1.bf16.msra.mxu0 %v226
    %256 = vmatprep.subr.bf16.mxu0 0
    %257 = vmatpush1.bf16.msra.mxu0 %v225
    %258 = vmatprep.subr.bf16.mxu0 0
    %259 = vmatpush1.bf16.msra.mxu0 %v224
    %260 = vmatprep.subr.bf16.mxu0 0
    %261 = vmatpush1.bf16.msra.mxu0 %v223
    %262 = vmatprep.subr.bf16.mxu0 0
    %263 = vmatpush1.bf16.msra.mxu0 %v222
    %264 = vmatprep.subr.bf16.mxu0 0
    %265 = vmatpush1.bf16.msra.mxu0 %v221
    %266 = vmatprep.subr.bf16.mxu0 0
    %267 = vmatpush1.bf16.msra.mxu0 %v220
    %268 = vmatprep.subr.bf16.mxu0 0
    %269 = vmatpush2.bf16.msra.mxu0 %v235
    %270 = vmatprep.subr.bf16.mxu0 0
    %271 = vmatpush2.bf16.msra.mxu0 %v234
    %272 = vmatprep.subr.bf16.mxu0 0
    %273 = vmatpush2.bf16.msra.mxu0 %v233
    %274 = vmatprep.subr.bf16.mxu0 0
    %275 = vmatpush2.bf16.msra.mxu0 %v232
    %276 = vmatprep.subr.bf16.mxu0 0
    %277 = vmatpush2.bf16.msra.mxu0 %v231
    %278 = vmatprep.subr.bf16.mxu0 0
    %279 = vmatpush2.bf16.msra.mxu0 %v230
    %280 = vmatprep.subr.bf16.mxu0 0
    %281 = vmatpush2.bf16.msra.mxu0 %v229
    %282 = vmatprep.subr.bf16.mxu0 0
    %283 = vmatpush2.bf16.msra.mxu0 %v228
    %284 = vmatprep.mubr.bf16.mxu0 %v116
    %285 = vmatmul.mubr.bf16.gmra.mxu0 %v115
    %v286 = vpop.f32.mrf.mxu0
    %v287 = vadd.f32 %v154, %v286
    %v288 = vpop.f32.mrf.mxu0
    %v289 = vpop.f32.mrf.mxu0
    %v290 = vpop.f32.mrf.mxu0
    %291 = vdwg.mxu0
    %v292 = vmax.f32 %v287, 0.0
    %v293 = vld [vmem:[%s5] sm:$0x1]
    %v295 = vlaneseq
    %v296 = vshrl.u32 %v295, 7
    %v297 = vsub.s32 0, %v296
    %v298 = vrot.slane %v293, %v297
    %v300 = vmul.f32 %v292, %v298
    %301 = vadd.xlane.f32.xlu0 %v300
    %v302 = vpop.xlane.xlu0 %301
    %v303 = vld [vmem:[#allocation2] sm:$0x1]
    %v305 = vlaneseq
    %v306 = vshrl.u32 %v305, 7
    %v307 = vsub.s32 0, %v306
    %v308 = vrot.slane %v303, %v307
    %v310 = vadd.f32 %v302, %v308
    %311 = vxpose.xlu0.b32.start [1/16] %v310, 128
    %312 = vxpose.xlu0.b32.cont [2/16] 0.0, 128
    %313 = vxpose.xlu0.b32.cont [3/16] 0.0, 128
    %314 = vxpose.xlu0.b32.cont [4/16] 0.0, 128
    %315 = vxpose.xlu0.b32.cont [5/16] 0.0, 128
    %316 = vxpose.xlu0.b32.cont [6/16] 0.0, 128
    %317 = vxpose.xlu0.b32.cont [7/16] 0.0, 128
    %318 = vxpose.xlu0.b32.cont [8/16] 0.0, 128
    %319 = vxpose.xlu0.b32.cont [9/16] 0.0, 128
    %320 = vxpose.xlu0.b32.cont [10/16] 0.0, 128
    %321 = vxpose.xlu0.b32.cont [11/16] 0.0, 128
    %322 = vxpose.xlu0.b32.cont [12/16] 0.0, 128
    %323 = vxpose.xlu0.b32.cont [13/16] 0.0, 128
    %324 = vxpose.xlu0.b32.cont [14/16] 0.0, 128
    %325 = vxpose.xlu0.b32.cont [15/16] 0.0, 128
    %326 = vxpose.xlu0.b32.end [16/16] 0.0, 128
    %v327 = vpop.trf.xlu0
    %v328 = vpop.trf.xlu0
    %v329 = vpop.trf.xlu0
    %v330 = vpop.trf.xlu0
    %v331 = vpop.trf.xlu0
    %v332 = vpop.trf.xlu0
    %v333 = vpop.trf.xlu0
    %v334 = vpop.trf.xlu0
    %v335 = vpop.trf.xlu0
    %v336 = vpop.trf.xlu0
    %v337 = vpop.trf.xlu0
    %v338 = vpop.trf.xlu0
    %v339 = vpop.trf.xlu0
    %v340 = vpop.trf.xlu0
    %v341 = vpop.trf.xlu0
    %v342 = vpop.trf.xlu0
    %vm343 = vcmask 57344
    %344 = vst.msk [vmem:[#allocation3] sm:$0x1] %vm343, %v327
    // Predicated region
    $region30: #{cv_bert_regressor.1} parent=1 // pred_check
      _
    $region31: #{cv_bert_regressor.1} parent=1 // pred_check_branch
      %346 = sbr.rel (0) target = $region33
    $region32: #{cv_bert_regressor.1} parent=1 // pred_region
      %s348 = ssub.s32 16, 16
      %349 = vsyncadd [#allocation4], %s348
      %s351 = sshll.u32 [#allocation3], 4
      %s352 = int_to_ptr.vmem [resolvable:$true] %s351
      %354 = dma.vmem_to_hbm [thread:$0]  %s352, 16, %s7, [#allocation4]
    $region33: #{cv_bert_regressor.1} parent=1 // pred_fallthru
      _
    // Predicated region
    $region34: #{cv_bert_regressor.1} parent=1 // pred_check
      _
    $region35: #{cv_bert_regressor.1} parent=1 // pred_check_branch
      %356 = sbr.rel (0) target = $region37
    $region36: #{cv_bert_regressor.1} parent=1 // pred_region
      %357 = dma.done [#allocation4], 16
    $region37: #{cv_bert_regressor.1} parent=1 // pred_fallthru
      _
    %358 = vsyncpa [#allocation4], 1

</llo_original>
